<compile_context>
chip_gen: v5e
topology: v5e:2x2
jax: 0.10.0
libtpu: 0.0.40
codegen_flags: <defaults>
</compile_context>

<pallas_src>
import functools
import math

import jax
import jax.numpy as jnp
from jax.experimental import pallas as pl
from jax.experimental.pallas import tpu as pltpu

_LANES = 1024          # last dim: large multiple of 128 -> few, unmasked vector stores
_TILE_ROWS = 512       # 512 x 1024 x 4 B = 2 MiB per f32 buffer

_LN4 = math.log(4.0)


def _floatbiter_kernel(x_ref, o_ref, *, b: int):
    # Compute in f32 regardless of streaming dtype (v5e VPU/EUP have no bf16 path).
    x = x_ref[...].astype(jnp.float32)

    # y * 2^(b-1) = log(clamp(x+1, 1, 16)) * (2^(b-1) / ln 4)   (constants folded)
    scale = float(2 ** (b - 1))
    t = jnp.log(jnp.clip(x + 1.0, 1.0, 16.0)) * (scale / _LN4)

    # Closed-form bit extraction + reconstruction (see header comment).
    ti = jnp.floor(t).astype(jnp.int32) & (2 ** b - 1)

    # 4^s - 1 with s = ti / 2^(b-1)  ==  exp(ti * (ln 4 / 2^(b-1))) - 1
    o_ref[...] = (jnp.exp(ti.astype(jnp.float32) * (_LN4 / scale)) - 1.0).astype(o_ref.dtype)


def floatbiter_forward(x: jax.Array, b: int) -> jax.Array:
    """Pallas implementation of FloatBiter(b).forward(x). x: any shape/float dtype."""
    orig_shape = x.shape
    orig_dtype = x.dtype
    n = x.size

    lanes = _LANES
    rows = -(-n // lanes)                        # ceil(n / lanes)
    rows8 = -(-rows // 8) * 8                    # sublane multiple of 8
    tile_rows = min(_TILE_ROWS, rows8)           # multiple of 8 either way
    rows_p = -(-rows8 // tile_rows) * tile_rows  # pad so every grid block is full
    total = rows_p * lanes
    pad = total - n

    flat = jnp.reshape(x, (n,))                  # keep original dtype; no wrapper up-cast
    if pad:
        flat = jnp.pad(flat, (0, pad))           # single pad pass
    x2d = flat.reshape(rows_p, lanes)

    kernel = functools.partial(_floatbiter_kernel, b=b)
    out2d = pl.pallas_call(
        kernel,
        out_shape=jax.ShapeDtypeStruct((rows_p, lanes), orig_dtype),
        grid_spec=pl.GridSpec(
            grid=(rows_p // tile_rows,),
            in_specs=[pl.BlockSpec((tile_rows, lanes), lambda i: (i, 0))],
            out_specs=pl.BlockSpec((tile_rows, lanes), lambda i: (i, 0)),
        ),
        compiler_params=pltpu.CompilerParams(
            dimension_semantics=("parallel",),   # lets v7x shard the grid across both TCs
        ),
    )(x2d)

    out = out2d.reshape(-1)
    if pad:
        out = out[:n]
    return out.reshape(orig_shape)               # already in orig_dtype; no extra cast


def _reference(x: jnp.ndarray, b: int) -> jnp.ndarray:
    """Plain-JAX per-bit reference mirroring the PyTorch module (forward value)."""
    xf = x.astype(jnp.float32)
    dot_base = (2.0 ** jnp.arange(0, b)).astype(jnp.float32)       # [1, 2, ..., 2^(b-1)]
    y = jnp.clip(xf + 1.0, 1.0, 16.0)[..., None]
    y = jnp.log(y) / jnp.float32(_LN4)                             # log base 4
    bits = jnp.floor(y * dot_base).astype(jnp.int32) % 2           # .long() % 2 (y >= 0)
    s = (bits.astype(jnp.float32) / dot_base).sum(-1)
    return (jnp.power(4.0, s) - 1.0).astype(x.dtype)


if __name__ == "__main__":
    B_BITS = 8                                   # FloatBiter(b=8)
    key = jax.random.PRNGKey(0)
    # Input resembling post-activation values in [0, 15] (module clamps x+1 to [1,16]).
    x = jax.random.uniform(
        key, (2, 4, 16, 16), dtype=jnp.float32, minval=0.0, maxval=15.0
    )

    out = floatbiter_forward(x, B_BITS)
    out = jax.block_until_ready(out)

    ref = _reference(x, B_BITS)
    assert out.shape == x.shape and out.dtype == x.dtype
    assert jnp.allclose(out, ref, atol=1e-3, rtol=1e-3)

    print("KERNEL_OK")
</pallas_src>

<mosaic_0001>
module attributes {stable_mosaic.version = 11 : i64} {
  func.func @_floatbiter_kernel(%arg0: i32, %arg1: memref<8x1024xf32, #tpu.memory_space<vmem>>, %arg2: memref<8x1024xf32, #tpu.memory_space<vmem>>) attributes {dimension_semantics = [#tpu.dimension_semantics<parallel>], iteration_bounds = array<i64: 1>, scalar_prefetch = 0 : i64, scratch_operands = 0 : i64, tpu.core_type = #tpu.core_type<tc>, window_params = [{transform_indices = @transform_0, window_bounds = array<i64: 8, 1024>}, {transform_indices = @transform_1, window_bounds = array<i64: 8, 1024>}]} {
    %c0 = arith.constant 0 : index
    %c0_0 = arith.constant 0 : index
    %0 = vector.load %arg1[%c0, %c0_0] : memref<8x1024xf32, #tpu.memory_space<vmem>>, vector<8x1024xf32>
    %cst = arith.constant 1.000000e+00 : f32
    %1 = vector.broadcast %cst : f32 to vector<8x1024xf32>
    %2 = arith.addf %0, %1 : vector<8x1024xf32>
    %cst_1 = arith.constant 1.000000e+00 : f32
    %cst_2 = arith.constant 1.600000e+01 : f32
    %3 = vector.broadcast %cst_1 : f32 to vector<8x1024xf32>
    %4 = arith.maximumf %3, %2 : vector<8x1024xf32>
    %5 = vector.broadcast %cst_2 : f32 to vector<8x1024xf32>
    %6 = arith.minimumf %5, %4 : vector<8x1024xf32>
    %7 = math.log %6 : vector<8x1024xf32>
    %cst_3 = arith.constant 92.3324813 : f32
    %8 = vector.broadcast %cst_3 : f32 to vector<8x1024xf32>
    %9 = arith.mulf %7, %8 : vector<8x1024xf32>
    %10 = math.floor %9 : vector<8x1024xf32>
    %11 = arith.fptosi %10 : vector<8x1024xf32> to vector<8x1024xi32>
    %c255_i32 = arith.constant 255 : i32
    %12 = vector.broadcast %c255_i32 : i32 to vector<8x1024xi32>
    %13 = arith.andi %11, %12 : vector<8x1024xi32>
    %14 = arith.sitofp %13 : vector<8x1024xi32> to vector<8x1024xf32>
    %cst_4 = arith.constant 0.0108304247 : f32
    %15 = vector.broadcast %cst_4 : f32 to vector<8x1024xf32>
    %16 = arith.mulf %14, %15 : vector<8x1024xf32>
    %17 = math.exp %16 : vector<8x1024xf32>
    %cst_5 = arith.constant 1.000000e+00 : f32
    %18 = vector.broadcast %cst_5 : f32 to vector<8x1024xf32>
    %19 = arith.subf %17, %18 : vector<8x1024xf32>
    %c0_6 = arith.constant 0 : index
    %c0_7 = arith.constant 0 : index
    %20 = vector.load %arg2[%c0_6, %c0_7] : memref<8x1024xf32, #tpu.memory_space<vmem>>, vector<8x1024xf32>
    tpu.vector_store %arg2[%c0_6, %c0_7], %19 {strides = array<i32>} : memref<8x1024xf32, #tpu.memory_space<vmem>>, vector<8x1024xf32>,
    return
  }
  func.func @transform_0(%arg0: i32) -> (i32, i32) {
    %c0_i32 = arith.constant 0 : i32
    %c0_i32_0 = arith.constant 0 : i32
    return %arg0, %c0_i32 : i32, i32
  }
  func.func @transform_1(%arg0: i32) -> (i32, i32) {
    %c0_i32 = arith.constant 0 : i32
    %c0_i32_0 = arith.constant 0 : i32
    return %arg0, %c0_i32 : i32, i32
  }
}

</mosaic_0001>

<llo_original>
// kernel: tpu_custom_call.1
$region0: #{tpu_custom_call.1}
  #allocation0 [shape = 'u32[]', space=smem, size = 0x4, offset = 0x4, fixed_abs, tag = 'smem constant byte address 0x4 - core index']
  #allocation1 [shape = 'u32[72,128]{1,0:T(1,128)}', space=vmem, size = 0x9000, scoped, tag = 'internal scratch']
  %s0 = inlined_call_operand.hbm [shape: f32[8,1024], index: 0, kind: input, shape index: {}]
  %s1 = inlined_call_operand.hbm [shape: f32[8,1024], index: 1, kind: output, shape index: {}]
  %s2 = sld [smem:[#allocation0]]
  $region18: #{tpu_custom_call.1} parent=0
    _
  %s4 = ssub.s32 1, %s2
  %s5 = scalar_select 0, %s4, %s2
  $region1: #{tpu_custom_call.1} parent=0
    #allocation2 [shape = 'u8[32768]{0}', space=vmem, size = 0x8000, scoped, tag = 'input window, operand 0, single buffered']
    #allocation3 [shape = 's32[1]{0}', space=sflag, size = 0x4, scoped, tag = 'scoped memory for tpu_custom_call.1']
    #allocation4 [shape = 's32[1]{0}', space=sflag, size = 0x4, scoped, tag = 'scoped memory for tpu_custom_call.1']
    #allocation5 [shape = 'u8[32768]{0}', space=vmem, size = 0x8000, scoped, tag = 'output window, operand 0, single buffered']
    %6 = vsyncpa [#allocation3], 0
    %7 = vsyncpa [#allocation4], 0
    // Predicated region
    $region2: #{tpu_custom_call.1} parent=1 // pred_check
      _
    $region3: #{tpu_custom_call.1} parent=1 // pred_check_branch
      %9 = sbr.rel (0) target = $region5
    $region4: #{tpu_custom_call.1} parent=1 // pred_region
      %11 = vsyncadd [#allocation3], 0
      %s13 = sshll.u32 %s0, 4
      %s14 = int_to_ptr.hbm [resolvable:$true] %s13
      %s15 = sshll.u32 [#allocation2], 4
      %s16 = int_to_ptr.vmem [resolvable:$true] %s15
      %18 = dma.hbm_to_vmem [thread:$0]  %s14, 1024, %s16, [#allocation3]
    $region5: #{tpu_custom_call.1} parent=1 // pred_fallthru
      _
    // Predicated region
    $region6: #{tpu_custom_call.1} parent=1 // pred_check
      _
    $region7: #{tpu_custom_call.1} parent=1 // pred_check_branch
      %20 = sbr.rel (0) target = $region9
    $region8: #{tpu_custom_call.1} parent=1 // pred_region
      %22 = dma.done [#allocation3], 1024
    $region9: #{tpu_custom_call.1} parent=1 // pred_fallthru
      _
    %v23 = vld [vmem:[#allocation2] sm:$0xff]
    %v24 = vld [vmem:[#allocation2 + $0x8] sm:$0xff]
    %v25 = vld [vmem:[#allocation2 + $0x10] sm:$0xff]
    %v26 = vld [vmem:[#allocation2 + $0x18] sm:$0xff]
    %v27 = vld [vmem:[#allocation2 + $0x20] sm:$0xff]
    %v28 = vld [vmem:[#allocation2 + $0x28] sm:$0xff]
    %v29 = vld [vmem:[#allocation2 + $0x30] sm:$0xff]
    %v30 = vld [vmem:[#allocation2 + $0x38] sm:$0xff]
    %v31 = vadd.f32 %v23, 1.0
    %v32 = vadd.f32 %v24, 1.0
    %v33 = vadd.f32 %v25, 1.0
    %v34 = vadd.f32 %v26, 1.0
    %v35 = vadd.f32 %v27, 1.0
    %v36 = vadd.f32 %v28, 1.0
    %v37 = vadd.f32 %v29, 1.0
    %v38 = vadd.f32 %v30, 1.0
    %v39 = vmax.f32 %v31, 1.0
    %v40 = vmax.f32 %v32, 1.0
    %v41 = vmax.f32 %v33, 1.0
    %v42 = vmax.f32 %v34, 1.0
    %v43 = vmax.f32 %v35, 1.0
    %v44 = vmax.f32 %v36, 1.0
    %v45 = vmax.f32 %v37, 1.0
    %v46 = vmax.f32 %v38, 1.0
    %v47 = vmin.f32 %v39, 16.0
    %v48 = vmin.f32 %v40, 16.0
    %v49 = vmin.f32 %v41, 16.0
    %v50 = vmin.f32 %v42, 16.0
    %v51 = vmin.f32 %v43, 16.0
    %v52 = vmin.f32 %v44, 16.0
    %v53 = vmin.f32 %v45, 16.0
    %v54 = vmin.f32 %v46, 16.0
    %v55 = vlog2.pop %v47
    %v56 = vmul.f32 %v55, 0.6931472
    %v57 = vlog2.pop %v48
    %v58 = vmul.f32 %v57, 0.6931472
    %v59 = vlog2.pop %v49
    %v60 = vmul.f32 %v59, 0.6931472
    %v61 = vlog2.pop %v50
    %v62 = vmul.f32 %v61, 0.6931472
    %v63 = vlog2.pop %v51
    %v64 = vmul.f32 %v63, 0.6931472
    %v65 = vlog2.pop %v52
    %v66 = vmul.f32 %v65, 0.6931472
    %v67 = vlog2.pop %v53
    %v68 = vmul.f32 %v67, 0.6931472
    %v69 = vlog2.pop %v54
    %v70 = vmul.f32 %v69, 0.6931472
    %v71 = vmul.f32 %v56, 92.33248
    %v72 = vmul.f32 %v58, 92.33248
    %v73 = vmul.f32 %v60, 92.33248
    %v74 = vmul.f32 %v62, 92.33248
    %v75 = vmul.f32 %v64, 92.33248
    %v76 = vmul.f32 %v66, 92.33248
    %v77 = vmul.f32 %v68, 92.33248
    %v78 = vmul.f32 %v70, 92.33248
    %v79 = vfloor.f32 %v71
    %v80 = vfloor.f32 %v72
    %v81 = vfloor.f32 %v73
    %v82 = vfloor.f32 %v74
    %v83 = vfloor.f32 %v75
    %v84 = vfloor.f32 %v76
    %v85 = vfloor.f32 %v77
    %v86 = vfloor.f32 %v78
    %v87 = vcvt.f32.s32.to.zero.pseudo %v79
    %v88 = vcvt.f32.s32.to.zero.pseudo %v80
    %v89 = vcvt.f32.s32.to.zero.pseudo %v81
    %v90 = vcvt.f32.s32.to.zero.pseudo %v82
    %v91 = vcvt.f32.s32.to.zero.pseudo %v83
    %v92 = vcvt.f32.s32.to.zero.pseudo %v84
    %v93 = vcvt.f32.s32.to.zero.pseudo %v85
    %v94 = vcvt.f32.s32.to.zero.pseudo %v86
    %v95 = vand.u32 %v87, 255
    %v96 = vand.u32 %v88, 255
    %v97 = vand.u32 %v89, 255
    %v98 = vand.u32 %v90, 255
    %v99 = vand.u32 %v91, 255
    %v100 = vand.u32 %v92, 255
    %v101 = vand.u32 %v93, 255
    %v102 = vand.u32 %v94, 255
    %v103 = vcvt.s32.f32 %v95
    %v104 = vcvt.s32.f32 %v96
    %v105 = vcvt.s32.f32 %v97
    %v106 = vcvt.s32.f32 %v98
    %v107 = vcvt.s32.f32 %v99
    %v108 = vcvt.s32.f32 %v100
    %v109 = vcvt.s32.f32 %v101
    %v110 = vcvt.s32.f32 %v102
    %v111 = vmul.f32 %v103, 0.010830425
    %v112 = vmul.f32 %v104, 0.010830425
    %v113 = vmul.f32 %v105, 0.010830425
    %v114 = vmul.f32 %v106, 0.010830425
    %v115 = vmul.f32 %v107, 0.010830425
    %v116 = vmul.f32 %v108, 0.010830425
    %v117 = vmul.f32 %v109, 0.010830425
    %v118 = vmul.f32 %v110, 0.010830425
    %v119 = vmul.f32 %v111, 1.442695
    %v120 = vpow.pop %v119
    %v121 = vmul.f32 %v112, 1.442695
    %v122 = vpow.pop %v121
    %v123 = vmul.f32 %v113, 1.442695
    %v124 = vpow.pop %v123
    %v125 = vmul.f32 %v114, 1.442695
    %v126 = vpow.pop %v125
    %v127 = vmul.f32 %v115, 1.442695
    %v128 = vpow.pop %v127
    %v129 = vmul.f32 %v116, 1.442695
    %v130 = vpow.pop %v129
    %v131 = vmul.f32 %v117, 1.442695
    %v132 = vpow.pop %v131
    %v133 = vmul.f32 %v118, 1.442695
    %v134 = vpow.pop %v133
    %v135 = vsub.f32 %v120, 1.0
    %v136 = vsub.f32 %v122, 1.0
    %v137 = vsub.f32 %v124, 1.0
    %v138 = vsub.f32 %v126, 1.0
    %v139 = vsub.f32 %v128, 1.0
    %v140 = vsub.f32 %v130, 1.0
    %v141 = vsub.f32 %v132, 1.0
    %v142 = vsub.f32 %v134, 1.0
    %143 = vst [vmem:[#allocation5] sm:$0xff] %v135
    %144 = vst [vmem:[#allocation5 + $0x8] sm:$0xff] %v136
    %145 = vst [vmem:[#allocation5 + $0x10] sm:$0xff] %v137
    %146 = vst [vmem:[#allocation5 + $0x18] sm:$0xff] %v138
    %147 = vst [vmem:[#allocation5 + $0x20] sm:$0xff] %v139
    %148 = vst [vmem:[#allocation5 + $0x28] sm:$0xff] %v140
    %149 = vst [vmem:[#allocation5 + $0x30] sm:$0xff] %v141
    %150 = vst [vmem:[#allocation5 + $0x38] sm:$0xff] %v142
    // Predicated region
    $region10: #{tpu_custom_call.1} parent=1 // pred_check
      _
    $region11: #{tpu_custom_call.1} parent=1 // pred_check_branch
      %152 = sbr.rel (0) target = $region13
    $region12: #{tpu_custom_call.1} parent=1 // pred_region
      %154 = vsyncadd [#allocation4], 0
      %s156 = sshll.u32 [#allocation5], 4
      %s157 = int_to_ptr.vmem [resolvable:$true] %s156
      %s158 = sshll.u32 %s1, 4
      %s159 = int_to_ptr.hbm [resolvable:$true] %s158
      %161 = dma.vmem_to_hbm [thread:$0]  %s157, 1024, %s159, [#allocation4]
    $region13: #{tpu_custom_call.1} parent=1 // pred_fallthru
      _
    // Predicated region
    $region14: #{tpu_custom_call.1} parent=1 // pred_check
      _
    $region15: #{tpu_custom_call.1} parent=1 // pred_check_branch
      %163 = sbr.rel (0) target = $region17
    $region16: #{tpu_custom_call.1} parent=1 // pred_region
      %165 = dma.done [#allocation4], 1024
    $region17: #{tpu_custom_call.1} parent=1 // pred_fallthru
      _
    %166 = vsyncpa [#allocation3], 1
    %167 = vsyncpa [#allocation4], 1

</llo_original>
